<compile_context>
chip_gen: v7x
topology: tpu7x:2x2x1
jax: 0.10.0
libtpu: 0.0.40
codegen_flags: <defaults>
</compile_context>

<pallas_src>
import math
import functools
from typing import NamedTuple, Optional

import jax
import jax.numpy as jnp
from jax import lax
from jax.experimental import pallas as pl
from jax.experimental.pallas import tpu as pltpu


_INV_SQRT2 = 1.0 / math.sqrt(2.0)


def _round_up(x, m):
    return ((x + m - 1) // m) * m


def _cdiv(a, b):
    return (a + b - 1) // b


class _FFNConfig(NamedTuple):
    tm: int            # row tile
    th: int            # hidden chunk
    vmem_limit: int    # bytes
    acc_in_out: bool   # accumulate directly into o_ref (f32 output)


def _tpu_info():
    """Best-effort static query of VMEM capacity and TensorCore count."""
    vmem_cap = 64 << 20            # conservative default (v7x per-TC VMEM)
    num_cores = 1
    try:
        vmem_cap = int(pltpu.get_tpu_info().vmem_capacity_bytes)
    except Exception:
        pass
    try:
        kind = jax.devices()[0].device_kind.lower()
        # v4 / v7x expose 2 TensorCores per chip to a single device.
        if "v7" in kind or "v4" in kind:
            num_cores = 2
    except Exception:
        pass
    return vmem_cap, num_cores


def _vmem_estimate(tm, th, dim, outdim, dsize, osize, acc_in_out):
    """Rough per-step VMEM footprint (double-buffered pipelined operands)."""
    b = 2 * tm * dim * dsize          # x tile
    b += 2 * dim * th * dsize         # w1 chunk
    b += 2 * th * dsize               # b1 chunk
    b += 2 * th * outdim * dsize      # w2 chunk
    b += 2 * outdim * osize           # b2
    b += 2 * tm * outdim * osize      # output tile
    if not acc_in_out:
        b += tm * outdim * 4          # f32 accumulator scratch
    b += tm * th * 4                  # f32 GELU intermediate
    return b


def _derive_config(M, dim, hidden, outdim, in_dtype, out_dtype,
                   block_rows, block_hidden):
    dsize = jnp.dtype(in_dtype).itemsize
    osize = jnp.dtype(out_dtype).itemsize
    vmem_cap, num_cores = _tpu_info()

    # Sublane alignment for the row tile (f32: 8, bf16: 16, int8/fp8: 32).
    align = {4: 8, 2: 16, 1: 32}.get(dsize, 8)

    # Accumulate directly in the resident output block when it is already f32.
    acc_in_out = jnp.dtype(out_dtype) == jnp.dtype(jnp.float32)

    # Row-tile cap per generation (VMEM capacity as a proxy): big-VMEM chips
    # (v5e/v6e, 128 MiB) want tm~768 to hide the weight stream; v7x (64 MiB)
    # is already compute-bound at ~512 and cannot afford more VMEM.
    big_vmem = vmem_cap >= (96 << 20)
    tm_cap = block_rows if block_rows is not None else (768 if big_vmem else 512)
    tm_cap = max(align, _round_up(int(tm_cap), align))

    tm = min(tm_cap, _round_up(M, align))

    # On dual-TC chips ensure the "parallel" row axis has >= 2 tiles so the
    # second TensorCore is not idle (single-TC chips keep one big tile).
    if num_cores >= 2 and M > align and _cdiv(_round_up(M, align), tm) < 2:
        tm = _round_up(_cdiv(M, 2), align)

    # Hidden chunk: full hidden when small (exact, no padding), otherwise a
    # 128-multiple that is shrunk first when VMEM is tight.
    th_target = int(block_hidden) if block_hidden is not None else 512
    if hidden <= max(th_target, 128):
        th = hidden
    else:
        th = max(128, _round_up(min(th_target, hidden), 128))

    budget = min(int(vmem_cap * 0.85), vmem_cap - (8 << 20))

    def fits(tm_, th_):
        return _vmem_estimate(tm_, th_, dim, outdim, dsize, osize, acc_in_out) <= budget

    # Shrink the hidden chunk first (no recompute cost), then the row tile.
    while (not fits(tm, th)) and th > 128 and th % 128 == 0:
        th = max(128, th // 2)
    while (not fits(tm, th)) and tm > 2 * align:
        tm = max(align, _round_up(tm // 2, align))

    est = _vmem_estimate(tm, th, dim, outdim, dsize, osize, acc_in_out)
    vmem_limit = min(budget, max(32 << 20, int(est * 1.5)))
    vmem_limit = max(vmem_limit, est + (4 << 20))
    vmem_limit = min(vmem_limit, vmem_cap - (4 << 20))

    return _FFNConfig(tm=int(tm), th=int(th), vmem_limit=int(vmem_limit),
                      acc_in_out=bool(acc_in_out))


def _gelu_exact_f32(h):
    # Exact erf-based GELU (matches PyTorch nn.GELU() default), in f32.
    return 0.5 * h * (1.0 + lax.erf(h * _INV_SQRT2))


def _ffn_kernel_scratch(x_ref, w1_ref, b1_ref, w2_ref, b2_ref, o_ref, acc_ref):
    """Variant with a separate f32 accumulator (non-f32 output dtype)."""
    h_idx = pl.program_id(1)

    @pl.when(h_idx == 0)
    def _():
        acc_ref[...] = jnp.zeros_like(acc_ref)

    h = jnp.dot(x_ref[...], w1_ref[...], preferred_element_type=jnp.float32)
    h = _gelu_exact_f32(h + b1_ref[...].astype(jnp.float32))
    acc_ref[...] += jnp.dot(h.astype(w2_ref.dtype), w2_ref[...],
                            preferred_element_type=jnp.float32)

    @pl.when(h_idx == pl.num_programs(1) - 1)
    def _():
        o_ref[...] = (acc_ref[...]
                      + b2_ref[...].astype(jnp.float32)).astype(o_ref.dtype)


def _ffn_kernel_accout(x_ref, w1_ref, b1_ref, w2_ref, b2_ref, o_ref):
    """Variant accumulating directly into the resident f32 output block."""
    h_idx = pl.program_id(1)

    @pl.when(h_idx == 0)
    def _():
        # Initialize with the second bias so it is added exactly once.
        o_ref[...] = jnp.broadcast_to(b2_ref[...].astype(o_ref.dtype), o_ref.shape)

    h = jnp.dot(x_ref[...], w1_ref[...], preferred_element_type=jnp.float32)
    h = _gelu_exact_f32(h + b1_ref[...].astype(jnp.float32))
    o_ref[...] += jnp.dot(h.astype(w2_ref.dtype), w2_ref[...],
                          preferred_element_type=jnp.float32)


@functools.partial(jax.jit, static_argnums=(5,))
def _feed_forward_impl(x, w1, b1, w2, b2, cfg: _FFNConfig):
    lead = x.shape[:-1]
    dim = x.shape[-1]
    hidden = w1.shape[1]
    outdim = w2.shape[1]
    M = int(math.prod(lead)) if lead else 1
    tm, th = cfg.tm, cfg.th

    x2d = x.reshape(M, dim)
    M_pad = _round_up(M, tm)
    if M_pad != M:
        x2d = jnp.pad(x2d, ((0, M_pad - M), (0, 0)))

    # Hidden-axis padding is numerically exact ONLY because the padded b1
    # entries are zero (GELU(0) = 0) and the padded w2 rows are zero.
    H_pad = _round_up(hidden, th)
    b1_2d = b1.reshape(1, hidden)
    b2_2d = b2.reshape(1, outdim)
    if H_pad != hidden:
        w1 = jnp.pad(w1, ((0, 0), (0, H_pad - hidden)))
        b1_2d = jnp.pad(b1_2d, ((0, 0), (0, H_pad - hidden)))
        w2 = jnp.pad(w2, ((0, H_pad - hidden), (0, 0)))

    grid = (M_pad // tm, H_pad // th)

    kernel = _ffn_kernel_accout if cfg.acc_in_out else _ffn_kernel_scratch
    scratch = [] if cfg.acc_in_out else [pltpu.VMEM((tm, outdim), jnp.float32)]

    dsize = jnp.dtype(x.dtype).itemsize
    cost = pl.CostEstimate(
        flops=2 * M * hidden * (dim + outdim),
        transcendentals=M * hidden,
        bytes_accessed=int(dsize * (M * dim + dim * hidden + hidden
                                    + hidden * outdim + outdim + M * outdim)),
    )

    out2d = pl.pallas_call(
        kernel,
        out_shape=jax.ShapeDtypeStruct((M_pad, outdim), x.dtype),
        grid_spec=pltpu.PrefetchScalarGridSpec(
            num_scalar_prefetch=0,
            grid=grid,
            in_specs=[
                # activation tile: block over rows, full feature dim
                pl.BlockSpec((tm, dim), lambda i, h: (i, 0)),
                # w1 / b1: streamed per hidden chunk
                pl.BlockSpec((dim, th), lambda i, h: (0, h)),
                pl.BlockSpec((1, th), lambda i, h: (0, h)),
                # w2: streamed per hidden chunk (rows), full outdim
                pl.BlockSpec((th, outdim), lambda i, h: (h, 0)),
                # b2: constant block (only used at init / epilogue)
                pl.BlockSpec((1, outdim), lambda i, h: (0, 0)),
            ],
            # Same output block across the hidden axis -> resident accumulator tile.
            out_specs=pl.BlockSpec((tm, outdim), lambda i, h: (i, 0)),
            scratch_shapes=scratch,
        ),
        compiler_params=pltpu.CompilerParams(
            dimension_semantics=("parallel", "arbitrary"),
            vmem_limit_bytes=cfg.vmem_limit,
        ),
        cost_estimate=cost,
    )(x2d, w1, b1_2d, w2, b2_2d)

    if M_pad != M:
        out2d = out2d[:M]
    return out2d.reshape(*lead, outdim)


def feed_forward(x, w1, b1, w2, b2, *, block_rows=None, block_hidden=None,
                 compute_dtype: Optional[jnp.dtype] = None):
    """x: (..., dim); w1: (dim, hidden); b1: (hidden,); w2: (hidden, outdim); b2: (outdim,).

    `compute_dtype=jnp.bfloat16` optionally casts operands for full-rate MXU and
    half the streamed weight bytes (accumulation stays f32); default keeps the
    native dtype so f32 inputs match the PyTorch reference bit-for-bit-ish.
    """
    if compute_dtype is not None:
        x = x.astype(compute_dtype)
        w1 = w1.astype(compute_dtype)
        b1 = b1.astype(compute_dtype)
        w2 = w2.astype(compute_dtype)
        b2 = b2.astype(compute_dtype)

    dim = x.shape[-1]
    hidden = w1.shape[1]
    outdim = w2.shape[1]
    M = int(math.prod(x.shape[:-1])) if x.ndim > 1 else 1

    cfg = _derive_config(M, dim, hidden, outdim, x.dtype, x.dtype,
                         block_rows, block_hidden)
    return _feed_forward_impl(x, w1, b1, w2, b2, cfg)


def init_params(key, dim, hidden_dim, outdim, dtype=jnp.float32):
    """Deterministic init mimicking PyTorch nn.Linear (uniform +/- 1/sqrt(fan_in)).

    Weights are stored as (in_features, out_features)."""
    k1, k2, k3, k4 = jax.random.split(key, 4)
    bound1 = 1.0 / math.sqrt(dim)
    bound2 = 1.0 / math.sqrt(hidden_dim)
    w1 = jax.random.uniform(k1, (dim, hidden_dim), dtype, -bound1, bound1)
    b1 = jax.random.uniform(k2, (hidden_dim,), dtype, -bound1, bound1)
    w2 = jax.random.uniform(k3, (hidden_dim, outdim), dtype, -bound2, bound2)
    b2 = jax.random.uniform(k4, (outdim,), dtype, -bound2, bound2)
    return w1, b1, w2, b2


def _reference(x, w1, b1, w2, b2):
    """Pure-JAX reference of FeedForward.forward (dropout=0.0 -> identity)."""
    h = x @ w1 + b1
    h = jax.nn.gelu(h, approximate=False)
    return h @ w2 + b2


if __name__ == "__main__":
    # Small shapes consistent with the module's forward: (batch, seq, dim).
    batch, seq = 2, 8
    dim, hidden_dim, outdim = 32, 64, 32

    key = jax.random.PRNGKey(0)
    kx, kp = jax.random.split(key)
    x = jax.random.normal(kx, (batch, seq, dim), jnp.float32)
    w1, b1, w2, b2 = init_params(kp, dim, hidden_dim, outdim)

    out = feed_forward(x, w1, b1, w2, b2)
    out = jax.block_until_ready(out)

    ref = _reference(x, w1, b1, w2, b2)
    assert out.shape == (batch, seq, outdim)
    assert jnp.allclose(out, ref, atol=1e-5, rtol=1e-5), "mismatch vs JAX reference"

    print("KERNEL_OK")
</pallas_src>

<mosaic_0001>
module attributes {stable_mosaic.version = 11 : i64} {
  func.func @_ffn_kernel_accout(%arg0: i32, %arg1: i32, %arg2: memref<16x32xf32, #tpu.memory_space<vmem>>, %arg3: memref<32x64xf32, #tpu.memory_space<vmem>>, %arg4: memref<1x64xf32, #tpu.memory_space<vmem>>, %arg5: memref<64x32xf32, #tpu.memory_space<vmem>>, %arg6: memref<1x32xf32, #tpu.memory_space<vmem>>, %arg7: memref<16x32xf32, #tpu.memory_space<vmem>>) attributes {dimension_semantics = [#tpu.dimension_semantics<parallel>, #tpu.dimension_semantics<arbitrary>], iteration_bounds = array<i64: 1, 1>, scalar_prefetch = 0 : i64, scratch_operands = 0 : i64, tpu.core_type = #tpu.core_type<tc>, window_params = [{transform_indices = @transform_0, window_bounds = array<i64: 16, 32>}, {transform_indices = @transform_1, window_bounds = array<i64: 32, 64>}, {transform_indices = @transform_2, window_bounds = array<i64: 1, 64>}, {transform_indices = @transform_3, window_bounds = array<i64: 64, 32>}, {pipeline_mode = #tpu.pipeline_mode<synchronous>, transform_indices = @transform_4, window_bounds = array<i64: 1, 32>}, {transform_indices = @transform_5, window_bounds = array<i64: 16, 32>}]} {
    %c0_i32 = arith.constant 0 : i32
    %0 = arith.cmpi eq, %arg1, %c0_i32 : i32
    %1 = arith.extui %0 : i1 to i32
    %c0_i32_0 = arith.constant 0 : i32
    %2 = arith.cmpi ne, %1, %c0_i32_0 : i32
    scf.if %2 {
      %c0_16 = arith.constant 0 : index
      %c0_17 = arith.constant 0 : index
      %22 = vector.load %arg6[%c0_16, %c0_17] : memref<1x32xf32, #tpu.memory_space<vmem>>, vector<1x32xf32>
      %23 = vector.shape_cast %22 : vector<1x32xf32> to vector<1x32xf32>
      %24 = vector.broadcast %23 : vector<1x32xf32> to vector<16x32xf32>
      %c0_18 = arith.constant 0 : index
      %c0_19 = arith.constant 0 : index
      %25 = vector.load %arg7[%c0_18, %c0_19] : memref<16x32xf32, #tpu.memory_space<vmem>>, vector<16x32xf32>
      tpu.vector_store %arg7[%c0_18, %c0_19], %24 {strides = array<i32>} : memref<16x32xf32, #tpu.memory_space<vmem>>, vector<16x32xf32>,
    } else {
    }
    %c0 = arith.constant 0 : index
    %c0_1 = arith.constant 0 : index
    %3 = vector.load %arg2[%c0, %c0_1] : memref<16x32xf32, #tpu.memory_space<vmem>>, vector<16x32xf32>
    %c0_2 = arith.constant 0 : index
    %c0_3 = arith.constant 0 : index
    %4 = vector.load %arg3[%c0_2, %c0_3] : memref<32x64xf32, #tpu.memory_space<vmem>>, vector<32x64xf32>
    %cst = arith.constant dense<0.000000e+00> : vector<16x64xf32>
    %5 = tpu.matmul %3, %4, %cst {dimension_numbers = #tpu.dot_dimension_numbers<[1], [0], [0], [1], [0, 0, 1, 1], [], []>} : vector<16x32xf32>, vector<32x64xf32>, vector<16x64xf32> -> vector<16x64xf32>
    %c0_4 = arith.constant 0 : index
    %c0_5 = arith.constant 0 : index
    %6 = vector.load %arg4[%c0_4, %c0_5] : memref<1x64xf32, #tpu.memory_space<vmem>>, vector<1x64xf32>
    %7 = vector.broadcast %6 : vector<1x64xf32> to vector<16x64xf32>
    %8 = arith.addf %5, %7 : vector<16x64xf32>
    %cst_6 = arith.constant 5.000000e-01 : f32
    %9 = vector.broadcast %cst_6 : f32 to vector<16x64xf32>
    %10 = arith.mulf %9, %8 : vector<16x64xf32>
    %cst_7 = arith.constant 0.707106769 : f32
    %11 = vector.broadcast %cst_7 : f32 to vector<16x64xf32>
    %12 = arith.mulf %8, %11 : vector<16x64xf32>
    %13 = math.erf %12 : vector<16x64xf32>
    %cst_8 = arith.constant 1.000000e+00 : f32
    %14 = vector.broadcast %cst_8 : f32 to vector<16x64xf32>
    %15 = arith.addf %14, %13 : vector<16x64xf32>
    %16 = arith.mulf %10, %15 : vector<16x64xf32>
    %c0_9 = arith.constant 0 : index
    %c0_10 = arith.constant 0 : index
    %17 = vector.load %arg7[%c0_9, %c0_10] : memref<16x32xf32, #tpu.memory_space<vmem>>, vector<16x32xf32>
    %c0_11 = arith.constant 0 : index
    %c0_12 = arith.constant 0 : index
    %18 = vector.load %arg5[%c0_11, %c0_12] : memref<64x32xf32, #tpu.memory_space<vmem>>, vector<64x32xf32>
    %cst_13 = arith.constant dense<0.000000e+00> : vector<16x32xf32>
    %19 = tpu.matmul %16, %18, %cst_13 {dimension_numbers = #tpu.dot_dimension_numbers<[1], [0], [0], [1], [0, 0, 1, 1], [], []>} : vector<16x64xf32>, vector<64x32xf32>, vector<16x32xf32> -> vector<16x32xf32>
    %20 = arith.addf %17, %19 : vector<16x32xf32>
    %c0_14 = arith.constant 0 : index
    %c0_15 = arith.constant 0 : index
    %21 = vector.load %arg7[%c0_14, %c0_15] : memref<16x32xf32, #tpu.memory_space<vmem>>, vector<16x32xf32>
    tpu.vector_store %arg7[%c0_14, %c0_15], %20 {strides = array<i32>} : memref<16x32xf32, #tpu.memory_space<vmem>>, vector<16x32xf32>,
    return
  }
  func.func @transform_0(%arg0: i32, %arg1: i32) -> (i32, i32) {
    %c0_i32 = arith.constant 0 : i32
    %c0_i32_0 = arith.constant 0 : i32
    return %arg0, %c0_i32 : i32, i32
  }
  func.func @transform_1(%arg0: i32, %arg1: i32) -> (i32, i32) {
    %c0_i32 = arith.constant 0 : i32
    %c0_i32_0 = arith.constant 0 : i32
    return %c0_i32, %arg1 : i32, i32
  }
  func.func @transform_2(%arg0: i32, %arg1: i32) -> (i32, i32) {
    %c0_i32 = arith.constant 0 : i32
    %c0_i32_0 = arith.constant 0 : i32
    return %c0_i32, %arg1 : i32, i32
  }
  func.func @transform_3(%arg0: i32, %arg1: i32) -> (i32, i32) {
    %c0_i32 = arith.constant 0 : i32
    %c0_i32_0 = arith.constant 0 : i32
    return %arg1, %c0_i32 : i32, i32
  }
  func.func @transform_4(%arg0: i32, %arg1: i32) -> (i32, i32) {
    %c0_i32 = arith.constant 0 : i32
    %c0_i32_0 = arith.constant 0 : i32
    %c0_i32_1 = arith.constant 0 : i32
    return %c0_i32, %c0_i32_0 : i32, i32
  }
  func.func @transform_5(%arg0: i32, %arg1: i32) -> (i32, i32) {
    %c0_i32 = arith.constant 0 : i32
    %c0_i32_0 = arith.constant 0 : i32
    return %arg0, %c0_i32 : i32, i32
  }
}

</mosaic_0001>

<llo_original>
// kernel: _feed_forward_impl.1
$region0: #{_feed_forward_impl.1}
  #allocation0 [shape = 'u32[]', space=smem, size = 0x4, offset = 0x4, fixed_abs, tag = 'smem constant byte address 0x4 - core index']
  #allocation1 [shape = 'u32[144,128]{1,0:T(1,128)}', space=vmem, size = 0x12000, scoped, tag = 'internal scratch']
  %s0 = inlined_call_operand.vmem [shape: f32[16,32], index: 0, kind: input, shape index: {}]
  %s1 = inlined_call_operand.vmem [shape: f32[32,64], index: 1, kind: input, shape index: {}]
  %s2 = inlined_call_operand.vmem [shape: f32[1,64], index: 2, kind: input, shape index: {}]
  %s3 = inlined_call_operand.vmem [shape: f32[64,32], index: 3, kind: input, shape index: {}]
  %s4 = inlined_call_operand.vmem [shape: f32[1,32], index: 4, kind: input, shape index: {}]
  %s5 = inlined_call_operand.hbm [shape: f32[16,32], index: 5, kind: output, shape index: {}]
  %s6 = sld [smem:[#allocation0]]
  $region34: #{_feed_forward_impl.1} parent=0
    _
  %s8 = ssub.s32 1, %s6
  %s9 = scalar_select 0, %s8, %s6
  $region1: #{_feed_forward_impl.1} parent=0
    #allocation2 [shape = 'u8[8192]{0}', space=vmem, size = 0x2000, scoped, tag = 'output window, operand 0, single buffered']
    #allocation3 [shape = 's32[1]{0}', space=sflag, size = 0x4, scoped, tag = 'scoped memory for _feed_forward_impl.1']
    %10 = vsyncpa [#allocation3], 0
    // Predicated region
    $region2: #{_feed_forward_impl.1} parent=1 // pred_check
      _
    $region3: #{_feed_forward_impl.1} parent=1 // pred_check_branch
      %12 = sbr.rel (0) target = $region5
    $region4: #{_feed_forward_impl.1} parent=1 // pred_region
      _
    $region5: #{_feed_forward_impl.1} parent=1 // pred_fallthru
      _
    // Predicated region
    $region6: #{_feed_forward_impl.1} parent=1 // pred_check
      _
    $region7: #{_feed_forward_impl.1} parent=1 // pred_check_branch
      %14 = sbr.rel (0) target = $region9
    $region8: #{_feed_forward_impl.1} parent=1 // pred_region
      _
    $region9: #{_feed_forward_impl.1} parent=1 // pred_fallthru
      _
    // Predicated region
    $region10: #{_feed_forward_impl.1} parent=1 // pred_check
      _
    $region11: #{_feed_forward_impl.1} parent=1 // pred_check_branch
      %16 = sbr.rel (0) target = $region13
    $region12: #{_feed_forward_impl.1} parent=1 // pred_region
      _
    $region13: #{_feed_forward_impl.1} parent=1 // pred_fallthru
      _
    // Predicated region
    $region14: #{_feed_forward_impl.1} parent=1 // pred_check
      _
    $region15: #{_feed_forward_impl.1} parent=1 // pred_check_branch
      %18 = sbr.rel (0) target = $region17
    $region16: #{_feed_forward_impl.1} parent=1 // pred_region
      _
    $region17: #{_feed_forward_impl.1} parent=1 // pred_fallthru
      _
    // Predicated region
    $region18: #{_feed_forward_impl.1} parent=1 // pred_check
      _
    $region19: #{_feed_forward_impl.1} parent=1 // pred_check_branch
      %20 = sbr.rel (0) target = $region21
    $region20: #{_feed_forward_impl.1} parent=1 // pred_region
      _
    $region21: #{_feed_forward_impl.1} parent=1 // pred_fallthru
      _
    %p21 = scmp.eq.s32.totalorder 0, 0
    // Predicated region
    $region22: #{_feed_forward_impl.1} parent=1 // pred_check
      %p22 = pneg %p21
    $region23: #{_feed_forward_impl.1} parent=1 // pred_check_branch
      %24 = sbr.rel (%p22) target = $region25
    $region24: #{_feed_forward_impl.1} parent=1 // pred_region
      %v25 = vld [vmem:[%s4] sm:$0x1]
      %v27 = vlaneseq
      %v28 = vshrl.u32 %v27, 7
      %v29 = vsub.s32 0, %v28
      %v30 = vrot.slane %v25, %v29
      %vm32 = vcmask 261120
      %33 = vst.msk [vmem:[#allocation2] sm:$0xff] %vm32, %v30
      %34 = vst.msk [vmem:[#allocation2 + $0x8] sm:$0xff] %vm32, %v30
    $region25: #{_feed_forward_impl.1} parent=1 // pred_fallthru
      _
    %v35 = vld [vmem:[%s0] sm:$0xff]
    %v36 = vld [vmem:[%s0 + $0x8] sm:$0xff]
    %v37 = vld [vmem:[%s1] sm:$0xff]
    %v38 = vld [vmem:[%s1 + $0x8] sm:$0xff]
    %v39 = vld [vmem:[%s1 + $0x10] sm:$0xff]
    %v40 = vld [vmem:[%s1 + $0x18] sm:$0xff]
    %v41 = vld [vmem:[%s2] sm:$0x1]
    %v43 = vlaneseq
    %v44 = vshrl.u32 %v43, 7
    %v45 = vsub.s32 0, %v44
    %v46 = vrot.slane %v41, %v45
    %vm48 = vcmask 261120
    %v50 = vsel %vm48, %v35, 0
    %v53 = vsel %vm48, %v36, 0
    %55 = vmatprep.subr.mxu0 0.0
    %56 = vmatpush1.msra.mxu0 %v37
    %57 = vmatprep.subr.mxu0 0.0
    %58 = vmatpush1.msra.mxu0 %v38
    %59 = vmatprep.subr.mxu0 0.0
    %60 = vmatpush1.msra.mxu0 %v39
    %61 = vmatprep.subr.mxu0 0.0
    %62 = vmatpush1.msra.mxu0 %v40
    %63 = vmatprep.subr.mxu0 0.0
    %64 = vmatpush1.msra.mxu0 0.0
    %65 = vmatprep.subr.mxu0 0.0
    %66 = vmatpush1.msra.mxu0 0.0
    %67 = vmatprep.subr.mxu0 0.0
    %68 = vmatpush1.msra.mxu0 0.0
    %69 = vmatprep.subr.mxu0 0.0
    %70 = vmatpush1.msra.mxu0 0.0
    %71 = vmatprep.subr.mxu0 0.0
    %72 = vmatpush1.msra.mxu0 0.0
    %73 = vmatprep.subr.mxu0 0.0
    %74 = vmatpush1.msra.mxu0 0.0
    %75 = vmatprep.subr.mxu0 0.0
    %76 = vmatpush1.msra.mxu0 0.0
    %77 = vmatprep.subr.mxu0 0.0
    %78 = vmatpush1.msra.mxu0 0.0
    %79 = vmatprep.subr.mxu0 0.0
    %80 = vmatpush1.msra.mxu0 0.0
    %81 = vmatprep.subr.mxu0 0.0
    %82 = vmatpush1.msra.mxu0 0.0
    %83 = vmatprep.subr.mxu0 0.0
    %84 = vmatpush1.msra.mxu0 0.0
    %85 = vmatprep.subr.mxu0 0.0
    %86 = vmatpush1.msra.mxu0 0.0
    %87 = vmatprep.subr.mxu0 0.0
    %88 = vmatpush1.msra.mxu0 0.0
    %89 = vmatprep.subr.mxu0 0.0
    %90 = vmatpush1.msra.mxu0 0.0
    %91 = vmatprep.subr.mxu0 0.0
    %92 = vmatpush1.msra.mxu0 0.0
    %93 = vmatprep.subr.mxu0 0.0
    %94 = vmatpush1.msra.mxu0 0.0
    %95 = vmatprep.subr.mxu0 0.0
    %96 = vmatpush1.msra.mxu0 0.0
    %97 = vmatprep.subr.mxu0 0.0
    %98 = vmatpush1.msra.mxu0 0.0
    %99 = vmatprep.subr.mxu0 0.0
    %100 = vmatpush1.msra.mxu0 0.0
    %101 = vmatprep.subr.mxu0 0.0
    %102 = vmatpush1.msra.mxu0 0.0
    %103 = vmatprep.subr.mxu0 0.0
    %104 = vmatpush1.msra.mxu0 0.0
    %105 = vmatprep.subr.mxu0 0.0
    %106 = vmatpush1.msra.mxu0 0.0
    %107 = vmatprep.subr.mxu0 0.0
    %108 = vmatpush1.msra.mxu0 0.0
    %109 = vmatprep.subr.mxu0 0.0
    %110 = vmatpush1.msra.mxu0 0.0
    %111 = vmatprep.subr.mxu0 0.0
    %112 = vmatpush1.msra.mxu0 0.0
    %113 = vmatprep.subr.mxu0 0.0
    %114 = vmatpush1.msra.mxu0 0.0
    %115 = vmatprep.subr.mxu0 0.0
    %116 = vmatpush1.msra.mxu0 0.0
    %117 = vmatprep.subr.mxu0 0.0
    %118 = vmatpush1.msra.mxu0 0.0
    %119 = vmatprep.mubr.f32.mxu0 0.0
    %120 = vmatmul.mubr.f32.gmra.mrb[0].mxu0 %v50
    %v121 = vpop.f32.mrb[0].mxu0
    %v122 = vadd.f32 %v46, %v121
    %v123 = vpop.f32.mrb[0].mxu0
    %124 = vmatprep.mubr.f32.mxu0 0.0
    %125 = vmatmul.mubr.f32.gmra.mrb[0].mxu0 %v53
    %v126 = vpop.f32.mrb[0].mxu0
    %v127 = vadd.f32 %v46, %v126
    %v128 = vpop.f32.mrb[0].mxu0
    %129 = vdwg.mxu0
    %v130 = vmul.f32 %v122, 0.5
    %v131 = vmul.f32 %v127, 0.5
    %v132 = vmul.f32 %v122, 0.70710677
    %v133 = vmul.f32 %v127, 0.70710677
    %v134 = verf.f32.pop %v132
    %v135 = verf.f32.pop %v133
    %v136 = vadd.f32 %v134, 1.0
    %v137 = vadd.f32 %v135, 1.0
    %v138 = vmul.f32 %v130, %v136
    %v139 = vmul.f32 %v131, %v137
    %v140 = vld [vmem:[#allocation2] sm:$0xff]
    %v141 = vld [vmem:[#allocation2 + $0x8] sm:$0xff]
    %v142 = vld [vmem:[%s3] sm:$0xff]
    %v143 = vld [vmem:[%s3 + $0x8] sm:$0xff]
    %v144 = vld [vmem:[%s3 + $0x10] sm:$0xff]
    %v145 = vld [vmem:[%s3 + $0x18] sm:$0xff]
    %v146 = vld [vmem:[%s3 + $0x20] sm:$0xff]
    %v147 = vld [vmem:[%s3 + $0x28] sm:$0xff]
    %v148 = vld [vmem:[%s3 + $0x30] sm:$0xff]
    %v149 = vld [vmem:[%s3 + $0x38] sm:$0xff]
    %vm150 = vcmask 523264
    %v152 = vsel %vm150, %v138, 0
    %v155 = vsel %vm150, %v139, 0
    %157 = vmatprep.subr.mxu0 0.0
    %158 = vmatpush1.msra.mxu0 %v142
    %159 = vmatprep.subr.mxu0 0.0
    %160 = vmatpush1.msra.mxu0 %v143
    %161 = vmatprep.subr.mxu0 0.0
    %162 = vmatpush1.msra.mxu0 %v144
    %163 = vmatprep.subr.mxu0 0.0
    %164 = vmatpush1.msra.mxu0 %v145
    %165 = vmatprep.subr.mxu0 0.0
    %166 = vmatpush1.msra.mxu0 %v146
    %167 = vmatprep.subr.mxu0 0.0
    %168 = vmatpush1.msra.mxu0 %v147
    %169 = vmatprep.subr.mxu0 0.0
    %170 = vmatpush1.msra.mxu0 %v148
    %171 = vmatprep.subr.mxu0 0.0
    %172 = vmatpush1.msra.mxu0 %v149
    %173 = vmatprep.subr.mxu0 0.0
    %174 = vmatpush1.msra.mxu0 0.0
    %175 = vmatprep.subr.mxu0 0.0
    %176 = vmatpush1.msra.mxu0 0.0
    %177 = vmatprep.subr.mxu0 0.0
    %178 = vmatpush1.msra.mxu0 0.0
    %179 = vmatprep.subr.mxu0 0.0
    %180 = vmatpush1.msra.mxu0 0.0
    %181 = vmatprep.subr.mxu0 0.0
    %182 = vmatpush1.msra.mxu0 0.0
    %183 = vmatprep.subr.mxu0 0.0
    %184 = vmatpush1.msra.mxu0 0.0
    %185 = vmatprep.subr.mxu0 0.0
    %186 = vmatpush1.msra.mxu0 0.0
    %187 = vmatprep.subr.mxu0 0.0
    %188 = vmatpush1.msra.mxu0 0.0
    %189 = vmatprep.subr.mxu0 0.0
    %190 = vmatpush1.msra.mxu0 0.0
    %191 = vmatprep.subr.mxu0 0.0
    %192 = vmatpush1.msra.mxu0 0.0
    %193 = vmatprep.subr.mxu0 0.0
    %194 = vmatpush1.msra.mxu0 0.0
    %195 = vmatprep.subr.mxu0 0.0
    %196 = vmatpush1.msra.mxu0 0.0
    %197 = vmatprep.subr.mxu0 0.0
    %198 = vmatpush1.msra.mxu0 0.0
    %199 = vmatprep.subr.mxu0 0.0
    %200 = vmatpush1.msra.mxu0 0.0
    %201 = vmatprep.subr.mxu0 0.0
    %202 = vmatpush1.msra.mxu0 0.0
    %203 = vmatprep.subr.mxu0 0.0
    %204 = vmatpush1.msra.mxu0 0.0
    %205 = vmatprep.subr.mxu0 0.0
    %206 = vmatpush1.msra.mxu0 0.0
    %207 = vmatprep.subr.mxu0 0.0
    %208 = vmatpush1.msra.mxu0 0.0
    %209 = vmatprep.subr.mxu0 0.0
    %210 = vmatpush1.msra.mxu0 0.0
    %211 = vmatprep.subr.mxu0 0.0
    %212 = vmatpush1.msra.mxu0 0.0
    %213 = vmatprep.subr.mxu0 0.0
    %214 = vmatpush1.msra.mxu0 0.0
    %215 = vmatprep.subr.mxu0 0.0
    %216 = vmatpush1.msra.mxu0 0.0
    %217 = vmatprep.subr.mxu0 0.0
    %218 = vmatpush1.msra.mxu0 0.0
    %219 = vmatprep.subr.mxu0 0.0
    %220 = vmatpush1.msra.mxu0 0.0
    %221 = vmatprep.mubr.f32.mxu0 0.0
    %222 = vmatmul.mubr.f32.gmra.mrb[0].mxu0 %v152
    %v223 = vpop.f32.mrb[0].mxu0
    %v224 = vadd.f32 0.0, %v223
    %v225 = vpop.f32.mrb[0].mxu0
    %226 = vmatprep.mubr.f32.mxu0 0.0
    %227 = vmatmul.mubr.f32.gmra.mrb[0].mxu0 %v155
    %v228 = vpop.f32.mrb[0].mxu0
    %v229 = vadd.f32 0.0, %v228
    %v230 = vpop.f32.mrb[0].mxu0
    %231 = vdwg.mxu0
    %v232 = vadd.f32 %v140, %v224
    %v233 = vadd.f32 %v141, %v229
    %234 = vst.msk [vmem:[#allocation2] sm:$0xff] %vm48, %v232
    %235 = vst.msk [vmem:[#allocation2 + $0x8] sm:$0xff] %vm48, %v233
    // Predicated region
    $region26: #{_feed_forward_impl.1} parent=1 // pred_check
      _
    $region27: #{_feed_forward_impl.1} parent=1 // pred_check_branch
      %237 = sbr.rel (0) target = $region29
    $region28: #{_feed_forward_impl.1} parent=1 // pred_region
      %s239 = ssub.s32 256, 256
      %240 = vsyncadd [#allocation3], %s239
      %s241 = sshll.u32 [#allocation2], 4
      %s242 = int_to_ptr.vmem [resolvable:$true] %s241
      %247 = dma.vmem_to_hbm [thread:$0]  %s242, 256, %s5, [#allocation3], 128, 128, 8
    $region29: #{_feed_forward_impl.1} parent=1 // pred_fallthru
      _
    // Predicated region
    $region30: #{_feed_forward_impl.1} parent=1 // pred_check
      _
    $region31: #{_feed_forward_impl.1} parent=1 // pred_check_branch
      %249 = sbr.rel (0) target = $region33
    $region32: #{_feed_forward_impl.1} parent=1 // pred_region
      %250 = dma.done [#allocation3], 256
    $region33: #{_feed_forward_impl.1} parent=1 // pred_fallthru
      _
    %251 = vsyncpa [#allocation3], 1

</llo_original>
